<compile_context>
chip_gen: v7x
topology: tpu7x:2x2x1
jax: 0.10.0
libtpu: 0.0.40
codegen_flags: <defaults>
</compile_context>

<pallas_src>
import functools
import numpy as np
import jax
import jax.numpy as jnp
from jax.experimental import pallas as pl
from jax.experimental.pallas import tpu as pltpu


# ----------------------------------------------------------------------------- config
ARGS = dict(
    order=1,
    ns=16,
    nv=4,
    num_rbf=4,
    num_channels=2,
    conv_layers=2,
    fc_dim=32,
    radius_emb_dim=8,
    radius_emb_max=5.0,
)
NODE_FEATURES = 6
EDGE_FEATURES = 4

_CP = pltpu.CompilerParams(dimension_semantics=("parallel",))


# ----------------------------------------------------------------------------- helpers
def _lane_tile(n, max_tile=1024):
    """Lane (last-dim) tile: multiple of 128, <= max_tile, >=2 grid steps when possible."""
    n128 = max(128, ((int(n) + 127) // 128) * 128)
    if n128 <= 128:
        return 128
    half = -(-(n128 // 2) // 128) * 128          # ceil(n/2) rounded up to 128 (v7x: 2 TCs)
    return min(max_tile, half)


def _pad_lanes(x, mult):
    pad = (-x.shape[-1]) % mult
    if pad == 0:
        return x
    cfg = [(0, 0)] * (x.ndim - 1) + [(0, pad)]
    return jnp.pad(x, cfg)


def scatter_mean(vals, idx, n):
    sums = jax.ops.segment_sum(vals, idx, num_segments=n)
    cnt = jax.ops.segment_sum(jnp.ones((vals.shape[0],), vals.dtype), idx, num_segments=n)
    cnt = jnp.maximum(cnt, 1.0)
    return sums / cnt[:, None]


def _path_scale(ns, nv):
    """e3nn path normalization (irrep_normalization='component', path_normalization='element'),
    folded into the fc_w2 columns (all TP paths are linear in the per-edge weights)."""
    a0 = 1.0 / (ns + nv)            # l_out = 0
    a1 = 3.0 / (ns + 2 * nv)        # l_out = 1
    cA = np.sqrt(a0)                        # 0x0->0 : w3j = 1
    cB = np.sqrt(a1) / np.sqrt(3.0)         # 0x1->1
    cC = np.sqrt(a1) / np.sqrt(3.0)         # 1x0->1
    cD = np.sqrt(a0) / np.sqrt(3.0)         # 1x1->0
    cE = np.sqrt(a1) / np.sqrt(6.0)         # 1x1->1 : eps/sqrt(6)
    return np.concatenate([
        np.full(ns * ns, cA), np.full(ns * nv, cB), np.full(nv * nv, cC),
        np.full(nv * ns, cD), np.full(nv * nv, cE)]).astype(np.float32)


def _final_perm(order, C):
    """Compose the reference sorter with our kernel's (scalars, then m-major vectors) layout."""
    idx, ordl = [], []
    for l in range(order + 1):
        for n in range(C):
            idx.extend([n] * (2 * l + 1))
            ordl.extend(range(l * l, (l + 1) * (l + 1)))
    idx = np.array(idx)
    ordl = np.array(ordl)
    sorter = np.argsort(idx * (ordl.max() + 1) + ordl)
    perm = np.empty_like(sorter)
    for j, k in enumerate(sorter):
        if k < C:
            perm[j] = k                      # scalar channel k
        else:
            c, m = divmod(k - C, 3)          # e3nn: channel-major (c, m)
            perm[j] = C + m * C + c          # kernel emits m-major (m, c)
    return jnp.asarray(perm)


# ----------------------------------------------------------------------------- node encoder + embedding
def _node_embed_kernel(x_ref, ew_ref, eb_ref, w1_ref, b1_ref, w2_ref, b2_ref, o_ref):
    x = x_ref[...].astype(jnp.bfloat16)
    s = jnp.dot(ew_ref[...], x, preferred_element_type=jnp.float32) + eb_ref[...]
    h = jnp.dot(w1_ref[...], s.astype(jnp.bfloat16),
                preferred_element_type=jnp.float32) + b1_ref[...]
    h = jnp.maximum(h, 0.0)
    o_ref[...] = jnp.dot(w2_ref[...], h.astype(jnp.bfloat16),
                         preferred_element_type=jnp.float32) + b2_ref[...]


def node_embed(x_raw, p, ns):
    """node_embedding(node_encoder(x)) -> feature-major [ns, N]."""
    N, nf = x_raw.shape
    tile = _lane_tile(N)
    xT = _pad_lanes(x_raw.T, tile)
    Np = xT.shape[1]
    out = pl.pallas_call(
        _node_embed_kernel,
        out_shape=jax.ShapeDtypeStruct((ns, Np), jnp.float32),
        grid=(Np // tile,),
        in_specs=[
            pl.BlockSpec((nf, tile), lambda i: (0, i)),
            pl.BlockSpec((ns, nf), lambda i: (0, 0)),
            pl.BlockSpec((ns, 1), lambda i: (0, 0)),
            pl.BlockSpec((ns, ns), lambda i: (0, 0)),
            pl.BlockSpec((ns, 1), lambda i: (0, 0)),
            pl.BlockSpec((ns, ns), lambda i: (0, 0)),
            pl.BlockSpec((ns, 1), lambda i: (0, 0)),
        ],
        out_specs=pl.BlockSpec((ns, tile), lambda i: (0, i)),
        compiler_params=_CP,
    )(xT,
      p["enc_w"].T.astype(jnp.bfloat16), p["enc_b"].reshape(ns, 1),
      p["nemb_w1"].T.astype(jnp.bfloat16), p["nemb_b1"].reshape(ns, 1),
      p["nemb_w2"].T.astype(jnp.bfloat16), p["nemb_b2"].reshape(ns, 1))
    return out[:, :N]


# ----------------------------------------------------------------------------- fused edge embedding
def _edge_embed_kernel(er_ref, d_ref, off_ref,
                       ew1_ref, eb1_ref, ew2_ref, eb2_ref,
                       rw1_ref, rb1_ref, rw2_ref, rb2_ref,
                       o_ref, *, coeff):
    R = off_ref.shape[0]
    te = d_ref.shape[1]

    # edge_embedding(edge_attr_raw)
    er = er_ref[...].astype(jnp.bfloat16)
    ha = jnp.dot(ew1_ref[...], er, preferred_element_type=jnp.float32) + eb1_ref[...]
    ha = jnp.maximum(ha, 0.0)
    a = jnp.dot(ew2_ref[...], ha.astype(jnp.bfloat16),
                preferred_element_type=jnp.float32) + eb2_ref[...]

    # Gaussian smearing of |edge_vec| computed in-kernel (EUP exp), then radius_embedding
    d = jnp.broadcast_to(d_ref[...], (R, te))
    off = jnp.broadcast_to(off_ref[...], (R, te))
    diff = d - off
    emb = jnp.exp(coeff * diff * diff)
    hr = jnp.dot(rw1_ref[...], emb.astype(jnp.bfloat16),
                 preferred_element_type=jnp.float32) + rb1_ref[...]
    hr = jnp.maximum(hr, 0.0)
    r = jnp.dot(rw2_ref[...], hr.astype(jnp.bfloat16),
                preferred_element_type=jnp.float32) + rb2_ref[...]

    o_ref[...] = a + r


def edge_embed(eraw_T, d_T, p, ns, R, r_max, tile):
    ef, Ep = eraw_T.shape
    offs = jnp.linspace(0.0, r_max, R).astype(jnp.float32).reshape(R, 1)
    step = r_max / (R - 1)
    coeff = float(-0.5 / (step * step))
    out = pl.pallas_call(
        functools.partial(_edge_embed_kernel, coeff=coeff),
        out_shape=jax.ShapeDtypeStruct((ns, Ep), jnp.float32),
        grid=(Ep // tile,),
        in_specs=[
            pl.BlockSpec((ef, tile), lambda i: (0, i)),
            pl.BlockSpec((1, tile), lambda i: (0, i)),
            pl.BlockSpec((R, 1), lambda i: (0, 0)),
            pl.BlockSpec((ns, ef), lambda i: (0, 0)),
            pl.BlockSpec((ns, 1), lambda i: (0, 0)),
            pl.BlockSpec((ns, ns), lambda i: (0, 0)),
            pl.BlockSpec((ns, 1), lambda i: (0, 0)),
            pl.BlockSpec((ns, R), lambda i: (0, 0)),
            pl.BlockSpec((ns, 1), lambda i: (0, 0)),
            pl.BlockSpec((ns, ns), lambda i: (0, 0)),
            pl.BlockSpec((ns, 1), lambda i: (0, 0)),
        ],
        out_specs=pl.BlockSpec((ns, tile), lambda i: (0, i)),
        compiler_params=_CP,
    )(eraw_T, d_T, offs,
      p["eemb_w1"].T.astype(jnp.bfloat16), p["eemb_b1"].reshape(ns, 1),
      p["eemb_w2"].T.astype(jnp.bfloat16), p["eemb_b2"].reshape(ns, 1),
      p["remb_w1"].T.astype(jnp.bfloat16), p["remb_b1"].reshape(ns, 1),
      p["remb_w2"].T.astype(jnp.bfloat16), p["remb_b2"].reshape(ns, 1))
    return out


# ----------------------------------------------------------------------------- fused edge conv (fc MLP + tensor product)
def _conv_edge_kernel(ea_ref, xsrc_ref, xdst_ref, xv_ref, sh_ref,
                      w1a_ref, w1b_ref, w1c_ref, b1_ref, w2_ref, b2_ref,
                      os_ref, ov_ref, *, ns, nv):
    """Feature-major fused conv: fc([edge_attr, x_src, x_dst]) -> per-edge TP weights
    (never leave VMEM) -> FullyConnectedTensorProduct (ns x0e + nv x1e) x (1x0e + 1x1e).

    Paths: A 0x0->0, B 0x1->1, C 1x0->1, D 1x1->0, E 1x1->1.
    Path coefficients are pre-folded into w2/b2; Y_0 == 1 so *sh0 multiplies are dropped.
    All feature axes live on sublanes; the edge tile lives on lanes (full-lane VPU work).
    """
    # --- fc MLP (fc_w1 pre-split into the three 16-row blocks of the concat)
    h = (jnp.dot(w1a_ref[...], ea_ref[...].astype(jnp.bfloat16),
                 preferred_element_type=jnp.float32)
         + jnp.dot(w1b_ref[...], xsrc_ref[...].astype(jnp.bfloat16),
                   preferred_element_type=jnp.float32)
         + jnp.dot(w1c_ref[...], xdst_ref[...].astype(jnp.bfloat16),
                   preferred_element_type=jnp.float32)
         + b1_ref[...])
    h = jnp.maximum(h, 0.0)
    w = jnp.dot(w2_ref[...], h.astype(jnp.bfloat16),
                preferred_element_type=jnp.float32) + b2_ref[...]       # [weight_numel, TE]

    xs = xdst_ref[...]                                   # [ns, TE]  TP scalar input (dst)
    xv = xv_ref[...]                                     # [3nv, TE] (m-major, u-minor)
    sh = sh_ref[...]                                     # [4, TE]; sh[0] == 1
    shm = [sh[1 + m:2 + m, :] for m in range(3)]         # 3 x [1, TE]
    xvm = [xv[m * nv:(m + 1) * nv, :] for m in range(3)]  # 3 x [nv, TE]

    # cross product cr_m = eps_{mab} xv_a * sh_b  and  <xv_u, sh_vec>
    crm = [xvm[1] * shm[2] - xvm[2] * shm[1],
           xvm[2] * shm[0] - xvm[0] * shm[2],
           xvm[0] * shm[1] - xvm[1] * shm[0]]
    dotv = xvm[0] * shm[0] + xvm[1] * shm[1] + xvm[2] * shm[2]          # [nv, TE]

    oA = 0
    oB = oA + ns * ns
    oC = oB + ns * nv
    oD = oC + nv * nv
    oE = oD + nv * ns

    te = xs.shape[1]

    # --- scalar outputs: paths A and D (contract over u with sublane slices + broadcasts)
    tS = jnp.zeros((ns, te), jnp.float32)
    for u in range(ns):
        tS = tS + w[oA + u * ns: oA + (u + 1) * ns, :] * xs[u:u + 1, :]
    for u in range(nv):
        tS = tS + w[oD + u * ns: oD + (u + 1) * ns, :] * dotv[u:u + 1, :]
    os_ref[...] = tS

    # --- vector outputs: paths B, C, E
    tB = jnp.zeros((nv, te), jnp.float32)
    for u in range(ns):
        tB = tB + w[oB + u * nv: oB + (u + 1) * nv, :] * xs[u:u + 1, :]
    outs = []
    for m in range(3):
        y = tB * shm[m]
        for u in range(nv):
            y = y + w[oC + u * nv: oC + (u + 1) * nv, :] * xvm[m][u:u + 1, :]
            y = y + w[oE + u * nv: oE + (u + 1) * nv, :] * crm[m][u:u + 1, :]
        outs.append(y)
    ov_ref[...] = jnp.concatenate(outs, axis=0)          # [3nv, TE] lane-dense store


def conv_layer(eaT, xsrcT, xdstT, xvT, shT, lp, ns, nv, tile):
    Ep = eaT.shape[1]
    fc_dim = lp["fc_w1"].shape[1]
    wn = lp["fc_w2"].shape[1]

    scale = jnp.asarray(_path_scale(ns, nv))
    w1T = lp["fc_w1"].T.astype(jnp.bfloat16)                      # [fc_dim, 3ns]
    w1a, w1b, w1c = w1T[:, :ns], w1T[:, ns:2 * ns], w1T[:, 2 * ns:3 * ns]
    b1 = lp["fc_b1"].reshape(fc_dim, 1)
    w2T = (lp["fc_w2"] * scale[None, :]).T.astype(jnp.bfloat16)   # [wn, fc_dim], coefs folded
    b2 = (lp["fc_b2"] * scale).reshape(wn, 1)

    out_s, out_v = pl.pallas_call(
        functools.partial(_conv_edge_kernel, ns=ns, nv=nv),
        out_shape=(jax.ShapeDtypeStruct((ns, Ep), jnp.float32),
                   jax.ShapeDtypeStruct((3 * nv, Ep), jnp.float32)),
        grid=(Ep // tile,),
        in_specs=[
            pl.BlockSpec((ns, tile), lambda i: (0, i)),
            pl.BlockSpec((ns, tile), lambda i: (0, i)),
            pl.BlockSpec((ns, tile), lambda i: (0, i)),
            pl.BlockSpec((3 * nv, tile), lambda i: (0, i)),
            pl.BlockSpec((4, tile), lambda i: (0, i)),
            pl.BlockSpec((fc_dim, ns), lambda i: (0, 0)),
            pl.BlockSpec((fc_dim, ns), lambda i: (0, 0)),
            pl.BlockSpec((fc_dim, ns), lambda i: (0, 0)),
            pl.BlockSpec((fc_dim, 1), lambda i: (0, 0)),
            pl.BlockSpec((wn, fc_dim), lambda i: (0, 0)),
            pl.BlockSpec((wn, 1), lambda i: (0, 0)),
        ],
        out_specs=(pl.BlockSpec((ns, tile), lambda i: (0, i)),
                   pl.BlockSpec((3 * nv, tile), lambda i: (0, i))),
        compiler_params=_CP,
    )(eaT, xsrcT, xdstT, xvT, shT, w1a, w1b, w1c, b1, w2T, b2)
    return out_s, out_v


# ----------------------------------------------------------------------------- fused final o3.Linear
def _final_linear_kernel(s_ref, v_ref, w0_ref, w1_ref, o_ref, *, nv):
    outs = [jnp.dot(w0_ref[...], s_ref[...].astype(jnp.bfloat16),
                    preferred_element_type=jnp.float32)]
    v = v_ref[...]
    for m in range(3):
        vm = v[m * nv:(m + 1) * nv, :].astype(jnp.bfloat16)
        outs.append(jnp.dot(w1_ref[...], vm, preferred_element_type=jnp.float32))
    o_ref[...] = jnp.concatenate(outs, axis=0)          # [4C, TN]: scalars then m-major vectors


def final_linear(node_sT, node_vT, w0, w1, ns, nv, C):
    N = node_sT.shape[1]
    tile = _lane_tile(N)
    sT = _pad_lanes(node_sT, tile)
    vT = _pad_lanes(node_vT, tile)
    Np = sT.shape[1]
    w0T = (w0.T * (1.0 / np.sqrt(ns))).astype(jnp.bfloat16)     # [C, ns]
    w1T = (w1.T * (1.0 / np.sqrt(nv))).astype(jnp.bfloat16)     # [C, nv]
    out = pl.pallas_call(
        functools.partial(_final_linear_kernel, nv=nv),
        out_shape=jax.ShapeDtypeStruct((4 * C, Np), jnp.float32),
        grid=(Np // tile,),
        in_specs=[
            pl.BlockSpec((ns, tile), lambda i: (0, i)),
            pl.BlockSpec((3 * nv, tile), lambda i: (0, i)),
            pl.BlockSpec((C, ns), lambda i: (0, 0)),
            pl.BlockSpec((C, nv), lambda i: (0, 0)),
        ],
        out_specs=pl.BlockSpec((4 * C, tile), lambda i: (0, i)),
        compiler_params=_CP,
    )(sT, vT, w0T, w1T)
    return out[:, :N]                                           # [4C, N]


# ----------------------------------------------------------------------------- parameters
def init_params(key, args, node_features, edge_features):
    ns, nv = args["ns"], args["nv"]
    C = args["num_rbf"] * args["num_channels"]
    keys = iter(jax.random.split(key, 64))

    def lin(din, dout):
        w = jax.random.normal(next(keys), (din, dout), jnp.float32) / np.sqrt(din)
        b = jax.random.normal(next(keys), (dout,), jnp.float32) * 0.01
        return w, b

    p = {}
    p["enc_w"], p["enc_b"] = lin(node_features, ns)
    p["nemb_w1"], p["nemb_b1"] = lin(ns, ns)
    p["nemb_w2"], p["nemb_b2"] = lin(ns, ns)
    p["eemb_w1"], p["eemb_b1"] = lin(edge_features, ns)
    p["eemb_w2"], p["eemb_b2"] = lin(ns, ns)
    p["remb_w1"], p["remb_b1"] = lin(args["radius_emb_dim"], ns)
    p["remb_w2"], p["remb_b2"] = lin(ns, ns)

    weight_numel = ns * ns + ns * nv + nv * nv + nv * ns + nv * nv
    convs = []
    for _ in range(args["conv_layers"]):
        c = {}
        c["fc_w1"], c["fc_b1"] = lin(3 * ns, args["fc_dim"])
        c["fc_w2"], c["fc_b2"] = lin(args["fc_dim"], weight_numel)
        convs.append(c)
    p["conv"] = convs

    # final o3.Linear (internal weights ~ N(0,1); 1/sqrt(fan_in) applied in final_linear)
    p["fin_w0"] = jax.random.normal(next(keys), (ns, C), jnp.float32)
    p["fin_w1"] = jax.random.normal(next(keys), (nv, C), jnp.float32)
    return p


# ----------------------------------------------------------------------------- forward
def forward(params, args, pos, node_attr_raw, edge_attr_raw, edge_index):
    ns, nv = args["ns"], args["nv"]
    C = args["num_rbf"] * args["num_channels"]
    R = args["radius_emb_dim"]
    N = pos.shape[0]
    E = edge_index.shape[1]

    # node_embedding(node_encoder(x)); vector features start at zero (F.pad to feature_irreps.dim)
    node_sT = node_embed(node_attr_raw, params, ns)              # [ns, N]
    node_vT = jnp.zeros((3 * nv, N), jnp.float32)                # [3nv, N] (m-major, u-minor)

    # pad the edge set once (indices padded -> every gathered array lands at Ep directly)
    te = _lane_tile(E)
    src = _pad_lanes(edge_index[0], te)
    dst = _pad_lanes(edge_index[1], te)
    Ep = src.shape[0]

    # build_conv_graph (radius=False)
    edge_vec = pos[src] - pos[dst]                               # [Ep, 3]
    d = jnp.linalg.norm(edge_vec, axis=-1)                       # [Ep]
    eraw_T = _pad_lanes(edge_attr_raw.T, te)                     # [ef, Ep]
    edge_attrT = edge_embed(eraw_T, d.reshape(1, Ep), params, ns, R,
                            args["radius_emb_max"], te)          # [ns, Ep]

    # spherical harmonics l<=1 (normalize=True, component normalization): Y0=1, Y1=sqrt(3)*u
    u = edge_vec / jnp.maximum(d, 1e-12)[:, None]
    shT = jnp.concatenate([jnp.ones((1, Ep), jnp.float32),
                           float(np.sqrt(3.0)) * u.T], axis=0)   # [4, Ep]

    # conv layers (DiffDock convention: features gathered at dst, scatter-mean onto src, residual)
    for lp in params["conv"]:
        xsrcT = node_sT[:, src]                                  # [ns, Ep]
        xdstT = node_sT[:, dst]                                  # [ns, Ep]
        xvT = node_vT[:, dst]                                    # [3nv, Ep]
        tp_sT, tp_vT = conv_layer(edge_attrT, xsrcT, xdstT, xvT, shT, lp, ns, nv, te)
        node_sT = node_sT + scatter_mean(tp_sT[:, :E].T, src[:E], N).T
        node_vT = node_vT + scatter_mean(tp_vT[:, :E].T, src[:E], N).T

    # final o3.Linear (scalar + all 3 vector components in one call), then sorter permutation
    outT = final_linear(node_sT, node_vT, params["fin_w0"], params["fin_w1"], ns, nv, C)
    out = outT.T                                                 # [N, 4C]
    out = out[:, _final_perm(args["order"], C)]
    return out.reshape(-1, args["num_channels"], args["num_rbf"],
                       (args["order"] + 1) ** 2)


# ----------------------------------------------------------------------------- main
if __name__ == "__main__":
    key = jax.random.PRNGKey(0)
    k_pos, k_node, k_edge, k_src, k_off, k_par = jax.random.split(key, 6)

    N, E = 16, 24
    pos = jax.random.normal(k_pos, (N, 3), jnp.float32) * 2.0
    node_attr_raw = jax.random.normal(k_node, (N, NODE_FEATURES), jnp.float32)
    edge_attr_raw = jax.random.normal(k_edge, (E, EDGE_FEATURES), jnp.float32)

    src = jax.random.randint(k_src, (E,), 0, N, dtype=jnp.int32)
    off = jax.random.randint(k_off, (E,), 1, N, dtype=jnp.int32)
    dst = (src + off) % N                    # guarantees src != dst (no zero edge vectors)
    edge_index = jnp.stack([src, dst], axis=0)

    params = init_params(k_par, ARGS, NODE_FEATURES, EDGE_FEATURES)

    out = forward(params, ARGS, pos, node_attr_raw, edge_attr_raw, edge_index)
    out = jax.block_until_ready(out)

    expected = (N, ARGS["num_channels"], ARGS["num_rbf"], (ARGS["order"] + 1) ** 2)
    assert out.shape == expected, (out.shape, expected)
    assert bool(jnp.all(jnp.isfinite(out)))
    print("KERNEL_OK")
</pallas_src>

<mosaic_0001>
module attributes {stable_mosaic.version = 11 : i64} {
  func.func @_node_embed_kernel(%arg0: i32, %arg1: memref<6x128xf32, #tpu.memory_space<vmem>>, %arg2: memref<16x6xbf16, #tpu.memory_space<vmem>>, %arg3: memref<16x1xf32, #tpu.memory_space<vmem>>, %arg4: memref<16x16xbf16, #tpu.memory_space<vmem>>, %arg5: memref<16x1xf32, #tpu.memory_space<vmem>>, %arg6: memref<16x16xbf16, #tpu.memory_space<vmem>>, %arg7: memref<16x1xf32, #tpu.memory_space<vmem>>, %arg8: memref<16x128xf32, #tpu.memory_space<vmem>>) attributes {dimension_semantics = [#tpu.dimension_semantics<parallel>], iteration_bounds = array<i64: 1>, scalar_prefetch = 0 : i64, scratch_operands = 0 : i64, tpu.core_type = #tpu.core_type<tc>, window_params = [{transform_indices = @transform_0, window_bounds = array<i64: 6, 128>}, {pipeline_mode = #tpu.pipeline_mode<synchronous>, transform_indices = @transform_1, window_bounds = array<i64: 16, 6>}, {pipeline_mode = #tpu.pipeline_mode<synchronous>, transform_indices = @transform_2, window_bounds = array<i64: 16, 1>}, {pipeline_mode = #tpu.pipeline_mode<synchronous>, transform_indices = @transform_3, window_bounds = array<i64: 16, 16>}, {pipeline_mode = #tpu.pipeline_mode<synchronous>, transform_indices = @transform_4, window_bounds = array<i64: 16, 1>}, {pipeline_mode = #tpu.pipeline_mode<synchronous>, transform_indices = @transform_5, window_bounds = array<i64: 16, 16>}, {pipeline_mode = #tpu.pipeline_mode<synchronous>, transform_indices = @transform_6, window_bounds = array<i64: 16, 1>}, {transform_indices = @transform_7, window_bounds = array<i64: 16, 128>}]} {
    %c0 = arith.constant 0 : index
    %c0_0 = arith.constant 0 : index
    %0 = vector.load %arg1[%c0, %c0_0] : memref<6x128xf32, #tpu.memory_space<vmem>>, vector<6x128xf32>
    %1 = arith.truncf %0 : vector<6x128xf32> to vector<6x128xbf16>
    %c0_1 = arith.constant 0 : index
    %c0_2 = arith.constant 0 : index
    %2 = vector.load %arg2[%c0_1, %c0_2] : memref<16x6xbf16, #tpu.memory_space<vmem>>, vector<16x6xbf16>
    %cst = arith.constant dense<0.000000e+00> : vector<16x128xf32>
    %3 = tpu.matmul %2, %1, %cst {dimension_numbers = #tpu.dot_dimension_numbers<[1], [0], [0], [1], [0, 0, 1, 1], [], []>} : vector<16x6xbf16>, vector<6x128xbf16>, vector<16x128xf32> -> vector<16x128xf32>
    %c0_3 = arith.constant 0 : index
    %c0_4 = arith.constant 0 : index
    %4 = vector.load %arg3[%c0_3, %c0_4] : memref<16x1xf32, #tpu.memory_space<vmem>>, vector<16x1xf32>
    %5 = vector.broadcast %4 : vector<16x1xf32> to vector<16x128xf32>
    %6 = arith.addf %3, %5 : vector<16x128xf32>
    %c0_5 = arith.constant 0 : index
    %c0_6 = arith.constant 0 : index
    %7 = vector.load %arg4[%c0_5, %c0_6] : memref<16x16xbf16, #tpu.memory_space<vmem>>, vector<16x16xbf16>
    %8 = arith.truncf %6 : vector<16x128xf32> to vector<16x128xbf16>
    %cst_7 = arith.constant dense<0.000000e+00> : vector<16x128xf32>
    %9 = tpu.matmul %7, %8, %cst_7 {dimension_numbers = #tpu.dot_dimension_numbers<[1], [0], [0], [1], [0, 0, 1, 1], [], []>} : vector<16x16xbf16>, vector<16x128xbf16>, vector<16x128xf32> -> vector<16x128xf32>
    %c0_8 = arith.constant 0 : index
    %c0_9 = arith.constant 0 : index
    %10 = vector.load %arg5[%c0_8, %c0_9] : memref<16x1xf32, #tpu.memory_space<vmem>>, vector<16x1xf32>
    %11 = vector.broadcast %10 : vector<16x1xf32> to vector<16x128xf32>
    %12 = arith.addf %9, %11 : vector<16x128xf32>
    %cst_10 = arith.constant 0.000000e+00 : f32
    %13 = vector.broadcast %cst_10 : f32 to vector<16x128xf32>
    %14 = arith.maximumf %12, %13 : vector<16x128xf32>
    %c0_11 = arith.constant 0 : index
    %c0_12 = arith.constant 0 : index
    %15 = vector.load %arg6[%c0_11, %c0_12] : memref<16x16xbf16, #tpu.memory_space<vmem>>, vector<16x16xbf16>
    %16 = arith.truncf %14 : vector<16x128xf32> to vector<16x128xbf16>
    %cst_13 = arith.constant dense<0.000000e+00> : vector<16x128xf32>
    %17 = tpu.matmul %15, %16, %cst_13 {dimension_numbers = #tpu.dot_dimension_numbers<[1], [0], [0], [1], [0, 0, 1, 1], [], []>} : vector<16x16xbf16>, vector<16x128xbf16>, vector<16x128xf32> -> vector<16x128xf32>
    %c0_14 = arith.constant 0 : index
    %c0_15 = arith.constant 0 : index
    %18 = vector.load %arg7[%c0_14, %c0_15] : memref<16x1xf32, #tpu.memory_space<vmem>>, vector<16x1xf32>
    %19 = vector.broadcast %18 : vector<16x1xf32> to vector<16x128xf32>
    %20 = arith.addf %17, %19 : vector<16x128xf32>
    %c0_16 = arith.constant 0 : index
    %c0_17 = arith.constant 0 : index
    %21 = vector.load %arg8[%c0_16, %c0_17] : memref<16x128xf32, #tpu.memory_space<vmem>>, vector<16x128xf32>
    tpu.vector_store %arg8[%c0_16, %c0_17], %20 {strides = array<i32>} : memref<16x128xf32, #tpu.memory_space<vmem>>, vector<16x128xf32>,
    return
  }
  func.func @transform_0(%arg0: i32) -> (i32, i32) {
    %c0_i32 = arith.constant 0 : i32
    %c0_i32_0 = arith.constant 0 : i32
    return %c0_i32, %arg0 : i32, i32
  }
  func.func @transform_1(%arg0: i32) -> (i32, i32) {
    %c0_i32 = arith.constant 0 : i32
    %c0_i32_0 = arith.constant 0 : i32
    %c0_i32_1 = arith.constant 0 : i32
    return %c0_i32, %c0_i32_0 : i32, i32
  }
  func.func @transform_2(%arg0: i32) -> (i32, i32) {
    %c0_i32 = arith.constant 0 : i32
    %c0_i32_0 = arith.constant 0 : i32
    %c0_i32_1 = arith.constant 0 : i32
    return %c0_i32, %c0_i32_0 : i32, i32
  }
  func.func @transform_3(%arg0: i32) -> (i32, i32) {
    %c0_i32 = arith.constant 0 : i32
    %c0_i32_0 = arith.constant 0 : i32
    %c0_i32_1 = arith.constant 0 : i32
    return %c0_i32, %c0_i32_0 : i32, i32
  }
  func.func @transform_4(%arg0: i32) -> (i32, i32) {
    %c0_i32 = arith.constant 0 : i32
    %c0_i32_0 = arith.constant 0 : i32
    %c0_i32_1 = arith.constant 0 : i32
    return %c0_i32, %c0_i32_0 : i32, i32
  }
  func.func @transform_5(%arg0: i32) -> (i32, i32) {
    %c0_i32 = arith.constant 0 : i32
    %c0_i32_0 = arith.constant 0 : i32
    %c0_i32_1 = arith.constant 0 : i32
    return %c0_i32, %c0_i32_0 : i32, i32
  }
  func.func @transform_6(%arg0: i32) -> (i32, i32) {
    %c0_i32 = arith.constant 0 : i32
    %c0_i32_0 = arith.constant 0 : i32
    %c0_i32_1 = arith.constant 0 : i32
    return %c0_i32, %c0_i32_0 : i32, i32
  }
  func.func @transform_7(%arg0: i32) -> (i32, i32) {
    %c0_i32 = arith.constant 0 : i32
    %c0_i32_0 = arith.constant 0 : i32
    return %c0_i32, %arg0 : i32, i32
  }
}

</mosaic_0001>

<llo_original>
// kernel: tpu_custom_call.1
$region0: #{tpu_custom_call.1}
  #allocation0 [shape = 'u32[]', space=smem, size = 0x4, offset = 0x4, fixed_abs, tag = 'smem constant byte address 0x4 - core index']
  #allocation1 [shape = 'u32[144,128]{1,0:T(1,128)}', space=vmem, size = 0x12000, scoped, tag = 'internal scratch']
  %s0 = inlined_call_operand.vmem [shape: f32[6,128], index: 0, kind: input, shape index: {}]
  %s1 = inlined_call_operand.vmem [shape: bf16[16,6], index: 1, kind: input, shape index: {}]
  %s2 = inlined_call_operand.vmem [shape: f32[16,1], index: 2, kind: input, shape index: {}]
  %s3 = inlined_call_operand.vmem [shape: bf16[16,16], index: 3, kind: input, shape index: {}]
  %s4 = inlined_call_operand.vmem [shape: f32[16,1], index: 4, kind: input, shape index: {}]
  %s5 = inlined_call_operand.vmem [shape: bf16[16,16], index: 5, kind: input, shape index: {}]
  %s6 = inlined_call_operand.vmem [shape: f32[16,1], index: 6, kind: input, shape index: {}]
  %s7 = inlined_call_operand.hbm [shape: f32[16,128], index: 7, kind: output, shape index: {}]
  %s8 = sld [smem:[#allocation0]]
  $region38: #{tpu_custom_call.1} parent=0
    _
  %s10 = ssub.s32 1, %s8
  %s11 = scalar_select 0, %s10, %s8
  $region1: #{tpu_custom_call.1} parent=0
    #allocation2 [shape = 'u8[8192]{0}', space=vmem, size = 0x2000, scoped, tag = 'output window, operand 0, single buffered']
    #allocation3 [shape = 's32[1]{0}', space=sflag, size = 0x4, scoped, tag = 'scoped memory for tpu_custom_call.1']
    %12 = vsyncpa [#allocation3], 0
    // Predicated region
    $region2: #{tpu_custom_call.1} parent=1 // pred_check
      _
    $region3: #{tpu_custom_call.1} parent=1 // pred_check_branch
      %14 = sbr.rel (0) target = $region5
    $region4: #{tpu_custom_call.1} parent=1 // pred_region
      _
    $region5: #{tpu_custom_call.1} parent=1 // pred_fallthru
      _
    // Predicated region
    $region6: #{tpu_custom_call.1} parent=1 // pred_check
      _
    $region7: #{tpu_custom_call.1} parent=1 // pred_check_branch
      %16 = sbr.rel (0) target = $region9
    $region8: #{tpu_custom_call.1} parent=1 // pred_region
      _
    $region9: #{tpu_custom_call.1} parent=1 // pred_fallthru
      _
    // Predicated region
    $region10: #{tpu_custom_call.1} parent=1 // pred_check
      _
    $region11: #{tpu_custom_call.1} parent=1 // pred_check_branch
      %18 = sbr.rel (0) target = $region13
    $region12: #{tpu_custom_call.1} parent=1 // pred_region
      _
    $region13: #{tpu_custom_call.1} parent=1 // pred_fallthru
      _
    // Predicated region
    $region14: #{tpu_custom_call.1} parent=1 // pred_check
      _
    $region15: #{tpu_custom_call.1} parent=1 // pred_check_branch
      %20 = sbr.rel (0) target = $region17
    $region16: #{tpu_custom_call.1} parent=1 // pred_region
      _
    $region17: #{tpu_custom_call.1} parent=1 // pred_fallthru
      _
    // Predicated region
    $region18: #{tpu_custom_call.1} parent=1 // pred_check
      _
    $region19: #{tpu_custom_call.1} parent=1 // pred_check_branch
      %22 = sbr.rel (0) target = $region21
    $region20: #{tpu_custom_call.1} parent=1 // pred_region
      _
    $region21: #{tpu_custom_call.1} parent=1 // pred_fallthru
      _
    // Predicated region
    $region22: #{tpu_custom_call.1} parent=1 // pred_check
      _
    $region23: #{tpu_custom_call.1} parent=1 // pred_check_branch
      %24 = sbr.rel (0) target = $region25
    $region24: #{tpu_custom_call.1} parent=1 // pred_region
      _
    $region25: #{tpu_custom_call.1} parent=1 // pred_fallthru
      _
    // Predicated region
    $region26: #{tpu_custom_call.1} parent=1 // pred_check
      _
    $region27: #{tpu_custom_call.1} parent=1 // pred_check_branch
      %26 = sbr.rel (0) target = $region29
    $region28: #{tpu_custom_call.1} parent=1 // pred_region
      _
    $region29: #{tpu_custom_call.1} parent=1 // pred_fallthru
      _
    %v28 = vld [vmem:[%s0] sm:$0x3f]
    %v29 = vpack.c.bf16 %v28, %v28
    %v30 = vld [vmem:[%s1] sm:$0xf]
    %v31 = vld [vmem:[%s1 + $0x4] sm:$0xf]
    %v32 = vld [vmem:[%s2] sm:$0xff]
    %v33 = vld [vmem:[%s2 + $0x8] sm:$0xff]
    %35 = vset.pattern.permute.xlu0 0
    %36 = vperm.xlu0 %35, %v32
    %v37 = vpop.permute.xlu0 %36
    %40 = vset.pattern.permute.xlu0 0
    %41 = vperm.xlu0 %40, %v33
    %v42 = vpop.permute.xlu0 %41
    %v46 = vunpack.c.l.b16 %v30
    %v47 = vunpack.c.l.b16 %v31
    %v48 = vpack.c.b16 %v47, %v46
    %vm49 = vcmask 48128
    %v51 = vsel %vm49, %v48, 0
    %vm53 = vcmask 1042432
    %v55 = vsel %vm53, %v29, 0
    %57 = vmatprep.subr.bf16.mxu0 0
    %58 = vmatpush1.bf16.msra.mxu0 %v55
    %59 = vmatprep.subr.bf16.mxu0 0
    %60 = vmatpush1.bf16.msra.mxu0 0
    %61 = vmatprep.subr.bf16.mxu0 0
    %62 = vmatpush1.bf16.msra.mxu0 0
    %63 = vmatprep.subr.bf16.mxu0 0
    %64 = vmatpush1.bf16.msra.mxu0 0
    %65 = vmatprep.subr.bf16.mxu0 0
    %66 = vmatpush1.bf16.msra.mxu0 0
    %67 = vmatprep.subr.bf16.mxu0 0
    %68 = vmatpush1.bf16.msra.mxu0 0
    %69 = vmatprep.subr.bf16.mxu0 0
    %70 = vmatpush1.bf16.msra.mxu0 0
    %71 = vmatprep.subr.bf16.mxu0 0
    %72 = vmatpush1.bf16.msra.mxu0 0
    %73 = vmatprep.subr.bf16.mxu0 0
    %74 = vmatpush1.bf16.msra.mxu0 0
    %75 = vmatprep.subr.bf16.mxu0 0
    %76 = vmatpush1.bf16.msra.mxu0 0
    %77 = vmatprep.subr.bf16.mxu0 0
    %78 = vmatpush1.bf16.msra.mxu0 0
    %79 = vmatprep.subr.bf16.mxu0 0
    %80 = vmatpush1.bf16.msra.mxu0 0
    %81 = vmatprep.subr.bf16.mxu0 0
    %82 = vmatpush1.bf16.msra.mxu0 0
    %83 = vmatprep.subr.bf16.mxu0 0
    %84 = vmatpush1.bf16.msra.mxu0 0
    %85 = vmatprep.subr.bf16.mxu0 0
    %86 = vmatpush1.bf16.msra.mxu0 0
    %87 = vmatprep.subr.bf16.mxu0 0
    %88 = vmatpush1.bf16.msra.mxu0 0
    %89 = vmatprep.mubr.bf16.mxu0 0
    %90 = vmatmul.mubr.bf16.gmra.mrb[0].mxu0 %v51
    %v91 = vpop.f32.mrb[0].mxu0
    %v92 = vadd.f32 %v37, %v91
    %v93 = vpop.f32.mrb[0].mxu0
    %v94 = vpop.f32.mrb[0].mxu0
    %v95 = vadd.f32 %v42, %v94
    %v96 = vpop.f32.mrb[0].mxu0
    %97 = vdwg.mxu0
    %v98 = vld [vmem:[%s3] sm:$0xf]
    %v99 = vld [vmem:[%s3 + $0x4] sm:$0xf]
    %v100 = vpack.c.bf16 %v95, %v92
    %v101 = vld [vmem:[%s4] sm:$0xff]
    %v102 = vld [vmem:[%s4 + $0x8] sm:$0xff]
    %104 = vset.pattern.permute.xlu0 0
    %105 = vperm.xlu0 %104, %v101
    %v106 = vpop.permute.xlu0 %105
    %109 = vset.pattern.permute.xlu0 0
    %110 = vperm.xlu0 %109, %v102
    %v111 = vpop.permute.xlu0 %110
    %v115 = vunpack.c.l.b16 %v98
    %v116 = vunpack.c.l.b16 %v99
    %v117 = vpack.c.b16 %v116, %v115
    %vm118 = vcmask 130048
    %v120 = vsel %vm118, %v117, 0
    %122 = vmatprep.subr.bf16.mxu0 0
    %123 = vmatpush1.bf16.msra.mxu0 %v100
    %124 = vmatprep.subr.bf16.mxu0 0
    %125 = vmatpush1.bf16.msra.mxu0 0
    %126 = vmatprep.subr.bf16.mxu0 0
    %127 = vmatpush1.bf16.msra.mxu0 0
    %128 = vmatprep.subr.bf16.mxu0 0
    %129 = vmatpush1.bf16.msra.mxu0 0
    %130 = vmatprep.subr.bf16.mxu0 0
    %131 = vmatpush1.bf16.msra.mxu0 0
    %132 = vmatprep.subr.bf16.mxu0 0
    %133 = vmatpush1.bf16.msra.mxu0 0
    %134 = vmatprep.subr.bf16.mxu0 0
    %135 = vmatpush1.bf16.msra.mxu0 0
    %136 = vmatprep.subr.bf16.mxu0 0
    %137 = vmatpush1.bf16.msra.mxu0 0
    %138 = vmatprep.subr.bf16.mxu0 0
    %139 = vmatpush1.bf16.msra.mxu0 0
    %140 = vmatprep.subr.bf16.mxu0 0
    %141 = vmatpush1.bf16.msra.mxu0 0
    %142 = vmatprep.subr.bf16.mxu0 0
    %143 = vmatpush1.bf16.msra.mxu0 0
    %144 = vmatprep.subr.bf16.mxu0 0
    %145 = vmatpush1.bf16.msra.mxu0 0
    %146 = vmatprep.subr.bf16.mxu0 0
    %147 = vmatpush1.bf16.msra.mxu0 0
    %148 = vmatprep.subr.bf16.mxu0 0
    %149 = vmatpush1.bf16.msra.mxu0 0
    %150 = vmatprep.subr.bf16.mxu0 0
    %151 = vmatpush1.bf16.msra.mxu0 0
    %152 = vmatprep.subr.bf16.mxu0 0
    %153 = vmatpush1.bf16.msra.mxu0 0
    %154 = vmatprep.mubr.bf16.mxu0 0
    %155 = vmatmul.mubr.bf16.gmra.mrb[0].mxu0 %v120
    %v156 = vpop.f32.mrb[0].mxu0
    %v157 = vadd.f32 %v106, %v156
    %v158 = vpop.f32.mrb[0].mxu0
    %v159 = vpop.f32.mrb[0].mxu0
    %v160 = vadd.f32 %v111, %v159
    %v161 = vpop.f32.mrb[0].mxu0
    %162 = vdwg.mxu0
    %v163 = vmax.f32 %v157, 0.0
    %v164 = vmax.f32 %v160, 0.0
    %v165 = vld [vmem:[%s5] sm:$0xf]
    %v166 = vld [vmem:[%s5 + $0x4] sm:$0xf]
    %v167 = vpack.c.bf16 %v164, %v163
    %v168 = vld [vmem:[%s6] sm:$0xff]
    %v169 = vld [vmem:[%s6 + $0x8] sm:$0xff]
    %171 = vset.pattern.permute.xlu0 0
    %172 = vperm.xlu0 %171, %v168
    %v173 = vpop.permute.xlu0 %172
    %176 = vset.pattern.permute.xlu0 0
    %177 = vperm.xlu0 %176, %v169
    %v178 = vpop.permute.xlu0 %177
    %v182 = vunpack.c.l.b16 %v165
    %v183 = vunpack.c.l.b16 %v166
    %v184 = vpack.c.b16 %v183, %v182
    %v186 = vsel %vm118, %v184, 0
    %188 = vmatprep.subr.bf16.mxu0 0
    %189 = vmatpush1.bf16.msra.mxu0 %v167
    %190 = vmatprep.subr.bf16.mxu0 0
    %191 = vmatpush1.bf16.msra.mxu0 0
    %192 = vmatprep.subr.bf16.mxu0 0
    %193 = vmatpush1.bf16.msra.mxu0 0
    %194 = vmatprep.subr.bf16.mxu0 0
    %195 = vmatpush1.bf16.msra.mxu0 0
    %196 = vmatprep.subr.bf16.mxu0 0
    %197 = vmatpush1.bf16.msra.mxu0 0
    %198 = vmatprep.subr.bf16.mxu0 0
    %199 = vmatpush1.bf16.msra.mxu0 0
    %200 = vmatprep.subr.bf16.mxu0 0
    %201 = vmatpush1.bf16.msra.mxu0 0
    %202 = vmatprep.subr.bf16.mxu0 0
    %203 = vmatpush1.bf16.msra.mxu0 0
    %204 = vmatprep.subr.bf16.mxu0 0
    %205 = vmatpush1.bf16.msra.mxu0 0
    %206 = vmatprep.subr.bf16.mxu0 0
    %207 = vmatpush1.bf16.msra.mxu0 0
    %208 = vmatprep.subr.bf16.mxu0 0
    %209 = vmatpush1.bf16.msra.mxu0 0
    %210 = vmatprep.subr.bf16.mxu0 0
    %211 = vmatpush1.bf16.msra.mxu0 0
    %212 = vmatprep.subr.bf16.mxu0 0
    %213 = vmatpush1.bf16.msra.mxu0 0
    %214 = vmatprep.subr.bf16.mxu0 0
    %215 = vmatpush1.bf16.msra.mxu0 0
    %216 = vmatprep.subr.bf16.mxu0 0
    %217 = vmatpush1.bf16.msra.mxu0 0
    %218 = vmatprep.subr.bf16.mxu0 0
    %219 = vmatpush1.bf16.msra.mxu0 0
    %220 = vmatprep.mubr.bf16.mxu0 0
    %221 = vmatmul.mubr.bf16.gmra.mrb[0].mxu0 %v186
    %v222 = vpop.f32.mrb[0].mxu0
    %v223 = vadd.f32 %v173, %v222
    %v224 = vpop.f32.mrb[0].mxu0
    %v225 = vpop.f32.mrb[0].mxu0
    %v226 = vadd.f32 %v178, %v225
    %v227 = vpop.f32.mrb[0].mxu0
    %228 = vdwg.mxu0
    %229 = vst [vmem:[#allocation2] sm:$0xff] %v223
    %230 = vst [vmem:[#allocation2 + $0x8] sm:$0xff] %v226
    // Predicated region
    $region30: #{tpu_custom_call.1} parent=1 // pred_check
      _
    $region31: #{tpu_custom_call.1} parent=1 // pred_check_branch
      %232 = sbr.rel (0) target = $region33
    $region32: #{tpu_custom_call.1} parent=1 // pred_region
      %s234 = ssub.s32 256, 256
      %235 = vsyncadd [#allocation3], %s234
      %s236 = sshll.u32 [#allocation2], 4
      %s237 = int_to_ptr.vmem [resolvable:$true] %s236
      %242 = dma.vmem_to_hbm [thread:$0]  %s237, 256, %s7, [#allocation3], 128, 128, 8
    $region33: #{tpu_custom_call.1} parent=1 // pred_fallthru
      _
    // Predicated region
    $region34: #{tpu_custom_call.1} parent=1 // pred_check
      _
    $region35: #{tpu_custom_call.1} parent=1 // pred_check_branch
      %244 = sbr.rel (0) target = $region37
    $region36: #{tpu_custom_call.1} parent=1 // pred_region
      %245 = dma.done [#allocation3], 256
    $region37: #{tpu_custom_call.1} parent=1 // pred_fallthru
      _
    %246 = vsyncpa [#allocation3], 1

</llo_original>
